<compile_context>
chip_gen: v6e
topology: v6e:2x2x1
jax: 0.10.0
libtpu: 0.0.40
codegen_flags: <defaults>
</compile_context>

<pallas_src>
import functools

import jax
import jax.numpy as jnp
from jax import lax
from jax.experimental import pallas as pl
from jax.experimental.pallas import tpu as pltpu

BN_EPS = 1e-5
LANES = 128

# int32 two's-complement views of standard 32-bit hash constants.
_C_ROW = -1640531527   # 0x9E3779B9
_C_COL = 2146121005    # 0x7FEB352D
_M1 = -2048144789      # 0x85EBCA6B
_M2 = -1028477387      # 0xC2B2AE35


def _keep_mask(shape, seed, dropout_p):
    """Bernoulli(1 - p) keep mask from a counter-based integer hash.

    Pure int32 jnp ops (iota / wrapping mul / xor / shift+mask / compare):
    bit-exact murmur3 finalizer, portable to both Mosaic and interpret mode.
    The final decision is a single integer compare (no float convert).
    """
    r = lax.broadcasted_iota(jnp.int32, shape, 0)
    c = lax.broadcasted_iota(jnp.int32, shape, 1)
    v = r * jnp.int32(_C_ROW) + c * jnp.int32(_C_COL) + seed
    # (v >> k) & mask == logical right shift for 32-bit values.
    v = v ^ ((v >> 16) & jnp.int32(0xFFFF))
    v = v * jnp.int32(_M1)
    v = v ^ ((v >> 13) & jnp.int32(0x7FFFF))
    v = v * jnp.int32(_M2)
    v = v ^ ((v >> 16) & jnp.int32(0xFFFF))
    # v is uniform over the int32 range; signed threshold gives P(keep)=1-p.
    thr = min(int(dropout_p * 4294967296.0), 4294967295) - 2147483648
    return v >= jnp.int32(thr)


def _bn_relu_dropout(h, gamma, beta, seed, dropout_p, training):
    """BatchNorm1d (train: batch stats, biased var) -> ReLU -> Dropout."""
    mean = jnp.mean(h, axis=0, keepdims=True)
    centered = h - mean
    var = jnp.mean(centered * centered, axis=0, keepdims=True)
    h = centered * lax.rsqrt(var + BN_EPS)
    h = h * gamma + beta
    h = jnp.maximum(h, 0.0)                       # ReLU
    if training and dropout_p > 0.0:              # Dropout (train mode)
        keep = _keep_mask(h.shape, seed, dropout_p)
        h = jnp.where(keep, h * (1.0 / (1.0 - dropout_p)), 0.0)
    return h


def _encoder_fused_kernel(x_ref, w1_ref, b1_ref, g1_ref, be1_ref,
                          w2_ref, b2_ref, g2_ref, be2_ref, seed_ref,
                          o_ref, *, dropout_p, training):
    """Both encoder blocks fused; hidden activation stays in VMEM/vregs."""
    # ---- Block 1: Linear (pre-transposed weight) -> BN -> ReLU -> Dropout ----
    h = jnp.dot(x_ref[...], w1_ref[...], preferred_element_type=jnp.float32)
    h = h + b1_ref[...]
    h = _bn_relu_dropout(h, g1_ref[...], be1_ref[...], seed_ref[0],
                         dropout_p, training)

    # ---- Block 2 ----
    h = jnp.dot(h, w2_ref[...], preferred_element_type=jnp.float32)
    h = h + b2_ref[...]
    h = _bn_relu_dropout(h, g2_ref[...], be2_ref[...], seed_ref[1],
                         dropout_p, training)

    o_ref[...] = h


def _round_up(n, m=LANES):
    return ((n + m - 1) // m) * m


def _pad_to(a, shape):
    pads = [(0, t - s) for s, t in zip(a.shape, shape)]
    if all(p == (0, 0) for p in pads):
        return a
    return jnp.pad(a, pads)   # zero padding keeps padded columns exactly 0


@functools.partial(jax.jit, static_argnames=("dropout_p", "training"))
def encoder_forward(x, params, seeds, *, dropout_p=0.2, training=True):
    (w1, b1, g1, be1), (w2, b2, g2, be2) = params
    n, d_in = x.shape
    hid = w1.shape[0]
    emb = w2.shape[0]

    d_in_p, hid_p, emb_p = _round_up(d_in), _round_up(hid), _round_up(emb)

    # One-time layout plumbing in XLA: pre-transpose weights, pad to 128 lanes.
    x_p = _pad_to(x, (n, d_in_p))
    w1t = _pad_to(w1.T, (d_in_p, hid_p))            # (Din_p, H_p)
    w2t = _pad_to(w2.T, (hid_p, emb_p))             # (H_p,  E_p)
    b1p = _pad_to(b1[None, :], (1, hid_p))
    g1p = _pad_to(g1[None, :], (1, hid_p))
    be1p = _pad_to(be1[None, :], (1, hid_p))
    b2p = _pad_to(b2[None, :], (1, emb_p))
    g2p = _pad_to(g2[None, :], (1, emb_p))
    be2p = _pad_to(be2[None, :], (1, emb_p))
    seeds_arr = jnp.asarray(seeds, jnp.int32).reshape(2)

    kernel = functools.partial(
        _encoder_fused_kernel, dropout_p=dropout_p, training=training)

    vmem = pl.BlockSpec(memory_space=pltpu.MemorySpace.VMEM)
    smem = pl.BlockSpec(memory_space=pltpu.MemorySpace.SMEM)

    flops = 2 * n * d_in_p * hid_p + 2 * n * hid_p * emb_p
    bytes_accessed = 4 * (x_p.size + w1t.size + w2t.size + n * emb_p
                          + 3 * (hid_p + emb_p))
    cost = pl.CostEstimate(flops=flops,
                           transcendentals=hid_p + emb_p,
                           bytes_accessed=bytes_accessed)

    out_p = pl.pallas_call(
        kernel,
        out_shape=jax.ShapeDtypeStruct((n, emb_p), jnp.float32),
        in_specs=[vmem] * 9 + [smem],
        out_specs=vmem,
        cost_estimate=cost,
    )(x_p, w1t, b1p, g1p, be1p, w2t, b2p, g2p, be2p, seeds_arr)

    return out_p[:, :emb]


def init_encoder_params(key, input_dim, hidden_dim, embed_dim):
    """Deterministic init following PyTorch defaults (Linear: U(-k, k))."""
    params = []
    dims = [(input_dim, hidden_dim), (hidden_dim, embed_dim)]
    for i, (d_in, d_out) in enumerate(dims):
        kw, kb = jax.random.split(jax.random.fold_in(key, i))
        bound = 1.0 / (d_in ** 0.5)
        w = jax.random.uniform(kw, (d_out, d_in), jnp.float32, -bound, bound)
        b = jax.random.uniform(kb, (d_out,), jnp.float32, -bound, bound)
        gamma = jnp.ones((d_out,), jnp.float32)   # BatchNorm1d default weight
        beta = jnp.zeros((d_out,), jnp.float32)   # BatchNorm1d default bias
        params.append((w, b, gamma, beta))
    return tuple(params)


if __name__ == "__main__":
    batch, input_dim, hidden_dim, embed_dim = 8, 16, 32, 24

    key = jax.random.PRNGKey(0)
    k_x, k_p = jax.random.split(key)

    x = jax.random.normal(k_x, (batch, input_dim), jnp.float32)
    params = init_encoder_params(k_p, input_dim, hidden_dim, embed_dim)
    seeds = jnp.array([1234, 5678], jnp.int32)

    out = encoder_forward(x, params, seeds, dropout_p=0.2, training=True)
    out = jax.block_until_ready(out)

    assert out.shape == (batch, embed_dim), out.shape
    assert out.dtype == jnp.float32
    assert bool(jnp.all(jnp.isfinite(out)))
    print("KERNEL_OK")
</pallas_src>

<mosaic_0001>
module attributes {stable_mosaic.version = 11 : i64} {
  func.func @_encoder_fused_kernel(%arg0: memref<8x128xf32, #tpu.memory_space<vmem>>, %arg1: memref<128x128xf32, #tpu.memory_space<vmem>>, %arg2: memref<1x128xf32, #tpu.memory_space<vmem>>, %arg3: memref<1x128xf32, #tpu.memory_space<vmem>>, %arg4: memref<1x128xf32, #tpu.memory_space<vmem>>, %arg5: memref<128x128xf32, #tpu.memory_space<vmem>>, %arg6: memref<1x128xf32, #tpu.memory_space<vmem>>, %arg7: memref<1x128xf32, #tpu.memory_space<vmem>>, %arg8: memref<1x128xf32, #tpu.memory_space<vmem>>, %arg9: memref<2xi32, #tpu.memory_space<smem>>, %arg10: memref<8x128xf32, #tpu.memory_space<vmem>>) attributes {dimension_semantics = [], scalar_prefetch = 0 : i64, scratch_operands = 0 : i64, tpu.core_type = #tpu.core_type<tc>} {
    %c0 = arith.constant 0 : index
    %c0_0 = arith.constant 0 : index
    %0 = vector.load %arg0[%c0, %c0_0] : memref<8x128xf32, #tpu.memory_space<vmem>>, vector<8x128xf32>
    %c0_1 = arith.constant 0 : index
    %c0_2 = arith.constant 0 : index
    %1 = vector.load %arg1[%c0_1, %c0_2] : memref<128x128xf32, #tpu.memory_space<vmem>>, vector<128x128xf32>
    %cst = arith.constant dense<0.000000e+00> : vector<8x128xf32>
    %2 = tpu.matmul %0, %1, %cst {dimension_numbers = #tpu.dot_dimension_numbers<[1], [0], [0], [1], [0, 0, 1, 1], [], []>} : vector<8x128xf32>, vector<128x128xf32>, vector<8x128xf32> -> vector<8x128xf32>
    %c0_3 = arith.constant 0 : index
    %c0_4 = arith.constant 0 : index
    %3 = vector.load %arg2[%c0_3, %c0_4] : memref<1x128xf32, #tpu.memory_space<vmem>>, vector<1x128xf32>
    %4 = vector.broadcast %3 : vector<1x128xf32> to vector<8x128xf32>
    %5 = arith.addf %2, %4 : vector<8x128xf32>
    %c0_5 = arith.constant 0 : index
    %c0_6 = arith.constant 0 : index
    %6 = vector.load %arg3[%c0_5, %c0_6] : memref<1x128xf32, #tpu.memory_space<vmem>>, vector<1x128xf32>
    %c0_7 = arith.constant 0 : index
    %c0_8 = arith.constant 0 : index
    %7 = vector.load %arg4[%c0_7, %c0_8] : memref<1x128xf32, #tpu.memory_space<vmem>>, vector<1x128xf32>
    %c0_9 = arith.constant 0 : index
    %8 = memref.load %arg9[%c0_9] : memref<2xi32, #tpu.memory_space<smem>>
    %cst_10 = arith.constant dense<0.000000e+00> : vector<128xf32>
    %9 = vector.multi_reduction <add>, %5, %cst_10 [0] : vector<8x128xf32> to vector<128xf32>
    %10 = vector.shape_cast %9 : vector<128xf32> to vector<1x128xf32>
    %cst_11 = arith.constant 8.000000e+00 : f32
    %11 = vector.broadcast %cst_11 : f32 to vector<1x128xf32>
    %12 = arith.divf %10, %11 : vector<1x128xf32>
    %13 = vector.broadcast %12 : vector<1x128xf32> to vector<8x128xf32>
    %14 = arith.subf %5, %13 : vector<8x128xf32>
    %15 = arith.mulf %14, %14 : vector<8x128xf32>
    %cst_12 = arith.constant dense<0.000000e+00> : vector<128xf32>
    %16 = vector.multi_reduction <add>, %15, %cst_12 [0] : vector<8x128xf32> to vector<128xf32>
    %17 = vector.shape_cast %16 : vector<128xf32> to vector<1x128xf32>
    %cst_13 = arith.constant 8.000000e+00 : f32
    %18 = vector.broadcast %cst_13 : f32 to vector<1x128xf32>
    %19 = arith.divf %17, %18 : vector<1x128xf32>
    %cst_14 = arith.constant 9.99999974E-6 : f32
    %20 = vector.broadcast %cst_14 : f32 to vector<1x128xf32>
    %21 = arith.addf %19, %20 : vector<1x128xf32>
    %22 = math.rsqrt %21 : vector<1x128xf32>
    %23 = vector.broadcast %22 : vector<1x128xf32> to vector<8x128xf32>
    %24 = arith.mulf %14, %23 : vector<8x128xf32>
    %25 = vector.broadcast %6 : vector<1x128xf32> to vector<8x128xf32>
    %26 = arith.mulf %24, %25 : vector<8x128xf32>
    %27 = vector.broadcast %7 : vector<1x128xf32> to vector<8x128xf32>
    %28 = arith.addf %26, %27 : vector<8x128xf32>
    %cst_15 = arith.constant 0.000000e+00 : f32
    %29 = vector.broadcast %cst_15 : f32 to vector<8x128xf32>
    %30 = arith.maximumf %28, %29 : vector<8x128xf32>
    %31 = tpu.iota {dimensions = array<i32: 0>} : vector<8x128xi32>
    %32 = tpu.iota {dimensions = array<i32: 1>} : vector<8x128xi32>
    %c-1640531527_i32 = arith.constant -1640531527 : i32
    %33 = vector.broadcast %c-1640531527_i32 : i32 to vector<8x128xi32>
    %34 = arith.muli %31, %33 : vector<8x128xi32>
    %c2146121005_i32 = arith.constant 2146121005 : i32
    %35 = vector.broadcast %c2146121005_i32 : i32 to vector<8x128xi32>
    %36 = arith.muli %32, %35 : vector<8x128xi32>
    %37 = arith.addi %34, %36 : vector<8x128xi32>
    %38 = vector.broadcast %8 : i32 to vector<8x128xi32>
    %39 = arith.addi %37, %38 : vector<8x128xi32>
    %c16_i32 = arith.constant 16 : i32
    %40 = vector.broadcast %c16_i32 : i32 to vector<8x128xi32>
    %41 = arith.shrsi %39, %40 : vector<8x128xi32>
    %c65535_i32 = arith.constant 65535 : i32
    %42 = vector.broadcast %c65535_i32 : i32 to vector<8x128xi32>
    %43 = arith.andi %41, %42 : vector<8x128xi32>
    %44 = arith.xori %39, %43 : vector<8x128xi32>
    %c-2048144789_i32 = arith.constant -2048144789 : i32
    %45 = vector.broadcast %c-2048144789_i32 : i32 to vector<8x128xi32>
    %46 = arith.muli %44, %45 : vector<8x128xi32>
    %c13_i32 = arith.constant 13 : i32
    %47 = vector.broadcast %c13_i32 : i32 to vector<8x128xi32>
    %48 = arith.shrsi %46, %47 : vector<8x128xi32>
    %c524287_i32 = arith.constant 524287 : i32
    %49 = vector.broadcast %c524287_i32 : i32 to vector<8x128xi32>
    %50 = arith.andi %48, %49 : vector<8x128xi32>
    %51 = arith.xori %46, %50 : vector<8x128xi32>
    %c-1028477387_i32 = arith.constant -1028477387 : i32
    %52 = vector.broadcast %c-1028477387_i32 : i32 to vector<8x128xi32>
    %53 = arith.muli %51, %52 : vector<8x128xi32>
    %c16_i32_16 = arith.constant 16 : i32
    %54 = vector.broadcast %c16_i32_16 : i32 to vector<8x128xi32>
    %55 = arith.shrsi %53, %54 : vector<8x128xi32>
    %c65535_i32_17 = arith.constant 65535 : i32
    %56 = vector.broadcast %c65535_i32_17 : i32 to vector<8x128xi32>
    %57 = arith.andi %55, %56 : vector<8x128xi32>
    %58 = arith.xori %53, %57 : vector<8x128xi32>
    %c-1288490189_i32 = arith.constant -1288490189 : i32
    %59 = vector.broadcast %c-1288490189_i32 : i32 to vector<8x128xi32>
    %60 = arith.cmpi sge, %58, %59 : vector<8x128xi32>
    %cst_18 = arith.constant 1.250000e+00 : f32
    %61 = vector.broadcast %cst_18 : f32 to vector<8x128xf32>
    %62 = arith.mulf %30, %61 : vector<8x128xf32>
    %cst_19 = arith.constant 0.000000e+00 : f32
    %63 = vector.broadcast %cst_19 : f32 to vector<8x128xf32>
    %64 = arith.select %60, %62, %63 : vector<8x128xi1>, vector<8x128xf32>
    %c0_20 = arith.constant 0 : index
    %c0_21 = arith.constant 0 : index
    %65 = vector.load %arg5[%c0_20, %c0_21] : memref<128x128xf32, #tpu.memory_space<vmem>>, vector<128x128xf32>
    %cst_22 = arith.constant dense<0.000000e+00> : vector<8x128xf32>
    %66 = tpu.matmul %64, %65, %cst_22 {dimension_numbers = #tpu.dot_dimension_numbers<[1], [0], [0], [1], [0, 0, 1, 1], [], []>} : vector<8x128xf32>, vector<128x128xf32>, vector<8x128xf32> -> vector<8x128xf32>
    %c0_23 = arith.constant 0 : index
    %c0_24 = arith.constant 0 : index
    %67 = vector.load %arg6[%c0_23, %c0_24] : memref<1x128xf32, #tpu.memory_space<vmem>>, vector<1x128xf32>
    %68 = vector.broadcast %67 : vector<1x128xf32> to vector<8x128xf32>
    %69 = arith.addf %66, %68 : vector<8x128xf32>
    %c0_25 = arith.constant 0 : index
    %c0_26 = arith.constant 0 : index
    %70 = vector.load %arg7[%c0_25, %c0_26] : memref<1x128xf32, #tpu.memory_space<vmem>>, vector<1x128xf32>
    %c0_27 = arith.constant 0 : index
    %c0_28 = arith.constant 0 : index
    %71 = vector.load %arg8[%c0_27, %c0_28] : memref<1x128xf32, #tpu.memory_space<vmem>>, vector<1x128xf32>
    %c1 = arith.constant 1 : index
    %72 = memref.load %arg9[%c1] : memref<2xi32, #tpu.memory_space<smem>>
    %cst_29 = arith.constant dense<0.000000e+00> : vector<128xf32>
    %73 = vector.multi_reduction <add>, %69, %cst_29 [0] : vector<8x128xf32> to vector<128xf32>
    %74 = vector.shape_cast %73 : vector<128xf32> to vector<1x128xf32>
    %cst_30 = arith.constant 8.000000e+00 : f32
    %75 = vector.broadcast %cst_30 : f32 to vector<1x128xf32>
    %76 = arith.divf %74, %75 : vector<1x128xf32>
    %77 = vector.broadcast %76 : vector<1x128xf32> to vector<8x128xf32>
    %78 = arith.subf %69, %77 : vector<8x128xf32>
    %79 = arith.mulf %78, %78 : vector<8x128xf32>
    %cst_31 = arith.constant dense<0.000000e+00> : vector<128xf32>
    %80 = vector.multi_reduction <add>, %79, %cst_31 [0] : vector<8x128xf32> to vector<128xf32>
    %81 = vector.shape_cast %80 : vector<128xf32> to vector<1x128xf32>
    %cst_32 = arith.constant 8.000000e+00 : f32
    %82 = vector.broadcast %cst_32 : f32 to vector<1x128xf32>
    %83 = arith.divf %81, %82 : vector<1x128xf32>
    %cst_33 = arith.constant 9.99999974E-6 : f32
    %84 = vector.broadcast %cst_33 : f32 to vector<1x128xf32>
    %85 = arith.addf %83, %84 : vector<1x128xf32>
    %86 = math.rsqrt %85 : vector<1x128xf32>
    %87 = vector.broadcast %86 : vector<1x128xf32> to vector<8x128xf32>
    %88 = arith.mulf %78, %87 : vector<8x128xf32>
    %89 = vector.broadcast %70 : vector<1x128xf32> to vector<8x128xf32>
    %90 = arith.mulf %88, %89 : vector<8x128xf32>
    %91 = vector.broadcast %71 : vector<1x128xf32> to vector<8x128xf32>
    %92 = arith.addf %90, %91 : vector<8x128xf32>
    %cst_34 = arith.constant 0.000000e+00 : f32
    %93 = vector.broadcast %cst_34 : f32 to vector<8x128xf32>
    %94 = arith.maximumf %92, %93 : vector<8x128xf32>
    %95 = tpu.iota {dimensions = array<i32: 0>} : vector<8x128xi32>
    %96 = tpu.iota {dimensions = array<i32: 1>} : vector<8x128xi32>
    %c-1640531527_i32_35 = arith.constant -1640531527 : i32
    %97 = vector.broadcast %c-1640531527_i32_35 : i32 to vector<8x128xi32>
    %98 = arith.muli %95, %97 : vector<8x128xi32>
    %c2146121005_i32_36 = arith.constant 2146121005 : i32
    %99 = vector.broadcast %c2146121005_i32_36 : i32 to vector<8x128xi32>
    %100 = arith.muli %96, %99 : vector<8x128xi32>
    %101 = arith.addi %98, %100 : vector<8x128xi32>
    %102 = vector.broadcast %72 : i32 to vector<8x128xi32>
    %103 = arith.addi %101, %102 : vector<8x128xi32>
    %c16_i32_37 = arith.constant 16 : i32
    %104 = vector.broadcast %c16_i32_37 : i32 to vector<8x128xi32>
    %105 = arith.shrsi %103, %104 : vector<8x128xi32>
    %c65535_i32_38 = arith.constant 65535 : i32
    %106 = vector.broadcast %c65535_i32_38 : i32 to vector<8x128xi32>
    %107 = arith.andi %105, %106 : vector<8x128xi32>
    %108 = arith.xori %103, %107 : vector<8x128xi32>
    %c-2048144789_i32_39 = arith.constant -2048144789 : i32
    %109 = vector.broadcast %c-2048144789_i32_39 : i32 to vector<8x128xi32>
    %110 = arith.muli %108, %109 : vector<8x128xi32>
    %c13_i32_40 = arith.constant 13 : i32
    %111 = vector.broadcast %c13_i32_40 : i32 to vector<8x128xi32>
    %112 = arith.shrsi %110, %111 : vector<8x128xi32>
    %c524287_i32_41 = arith.constant 524287 : i32
    %113 = vector.broadcast %c524287_i32_41 : i32 to vector<8x128xi32>
    %114 = arith.andi %112, %113 : vector<8x128xi32>
    %115 = arith.xori %110, %114 : vector<8x128xi32>
    %c-1028477387_i32_42 = arith.constant -1028477387 : i32
    %116 = vector.broadcast %c-1028477387_i32_42 : i32 to vector<8x128xi32>
    %117 = arith.muli %115, %116 : vector<8x128xi32>
    %c16_i32_43 = arith.constant 16 : i32
    %118 = vector.broadcast %c16_i32_43 : i32 to vector<8x128xi32>
    %119 = arith.shrsi %117, %118 : vector<8x128xi32>
    %c65535_i32_44 = arith.constant 65535 : i32
    %120 = vector.broadcast %c65535_i32_44 : i32 to vector<8x128xi32>
    %121 = arith.andi %119, %120 : vector<8x128xi32>
    %122 = arith.xori %117, %121 : vector<8x128xi32>
    %c-1288490189_i32_45 = arith.constant -1288490189 : i32
    %123 = vector.broadcast %c-1288490189_i32_45 : i32 to vector<8x128xi32>
    %124 = arith.cmpi sge, %122, %123 : vector<8x128xi32>
    %cst_46 = arith.constant 1.250000e+00 : f32
    %125 = vector.broadcast %cst_46 : f32 to vector<8x128xf32>
    %126 = arith.mulf %94, %125 : vector<8x128xf32>
    %cst_47 = arith.constant 0.000000e+00 : f32
    %127 = vector.broadcast %cst_47 : f32 to vector<8x128xf32>
    %128 = arith.select %124, %126, %127 : vector<8x128xi1>, vector<8x128xf32>
    %c0_48 = arith.constant 0 : index
    %c0_49 = arith.constant 0 : index
    %129 = vector.load %arg10[%c0_48, %c0_49] : memref<8x128xf32, #tpu.memory_space<vmem>>, vector<8x128xf32>
    tpu.vector_store %arg10[%c0_48, %c0_49], %128 {strides = array<i32>} : memref<8x128xf32, #tpu.memory_space<vmem>>, vector<8x128xf32>,
    return
  }
}

</mosaic_0001>

<llo_original>
// kernel: encoder_forward.1
$region0: #{encoder_forward.1}
  #allocation0 [shape = 'u32[]', space=smem, size = 0x4, offset = 0x4, fixed_abs, tag = 'smem constant byte address 0x4 - core index']
  #allocation1 [shape = 'u32[144,128]{1,0:T(1,128)}', space=vmem, size = 0x12000, scoped, tag = 'internal scratch']
  %s0 = inlined_call_operand.vmem [shape: f32[8,128], index: 0, kind: input, shape index: {}]
  %s1 = inlined_call_operand.vmem [shape: f32[128,128], index: 1, kind: input, shape index: {}]
  %s2 = inlined_call_operand.vmem [shape: f32[1,128], index: 2, kind: input, shape index: {}]
  %s3 = inlined_call_operand.vmem [shape: f32[1,128], index: 3, kind: input, shape index: {}]
  %s4 = inlined_call_operand.vmem [shape: f32[1,128], index: 4, kind: input, shape index: {}]
  %s5 = inlined_call_operand.vmem [shape: f32[128,128], index: 5, kind: input, shape index: {}]
  %s6 = inlined_call_operand.vmem [shape: f32[1,128], index: 6, kind: input, shape index: {}]
  %s7 = inlined_call_operand.vmem [shape: f32[1,128], index: 7, kind: input, shape index: {}]
  %s8 = inlined_call_operand.vmem [shape: f32[1,128], index: 8, kind: input, shape index: {}]
  %s9 = inlined_call_operand.vmem [shape: s32[2], index: 9, kind: input, shape index: {}]
  %s10 = inlined_call_operand.hbm [shape: f32[8,128], index: 10, kind: output, shape index: {}]
  %s11 = sld [smem:[#allocation0]]
  $region54: #{encoder_forward.1} parent=0
    _
  %s13 = ssub.s32 1, %s11
  %s14 = scalar_select 0, %s13, %s11
  $region1: #{encoder_forward.1} parent=0
    #allocation2 [shape = 'u8[512]{0}', space=smem, size = 0x200, scoped, tag = 'input window, operand 9, single buffered']
    #allocation3 [shape = 's32[1]{0}', space=sflag, size = 0x4, scoped, tag = 'scoped memory for encoder_forward.1']
    #allocation4 [shape = 's32[1]{0}', space=sflag, size = 0x4, scoped, tag = 'scoped memory for encoder_forward.1']
    #allocation5 [shape = 'u8[4096]{0}', space=vmem, size = 0x1000, scoped, tag = 'output window, operand 0, single buffered']
    %15 = vsyncpa [#allocation4], 0
    %16 = vsyncpa [#allocation3], 0
    // Predicated region
    $region2: #{encoder_forward.1} parent=1 // pred_check
      _
    $region3: #{encoder_forward.1} parent=1 // pred_check_branch
      %18 = sbr.rel (0) target = $region5
    $region4: #{encoder_forward.1} parent=1 // pred_region
      _
    $region5: #{encoder_forward.1} parent=1 // pred_fallthru
      _
    // Predicated region
    $region6: #{encoder_forward.1} parent=1 // pred_check
      _
    $region7: #{encoder_forward.1} parent=1 // pred_check_branch
      %20 = sbr.rel (0) target = $region9
    $region8: #{encoder_forward.1} parent=1 // pred_region
      _
    $region9: #{encoder_forward.1} parent=1 // pred_fallthru
      _
    // Predicated region
    $region10: #{encoder_forward.1} parent=1 // pred_check
      _
    $region11: #{encoder_forward.1} parent=1 // pred_check_branch
      %22 = sbr.rel (0) target = $region13
    $region12: #{encoder_forward.1} parent=1 // pred_region
      _
    $region13: #{encoder_forward.1} parent=1 // pred_fallthru
      _
    // Predicated region
    $region14: #{encoder_forward.1} parent=1 // pred_check
      _
    $region15: #{encoder_forward.1} parent=1 // pred_check_branch
      %24 = sbr.rel (0) target = $region17
    $region16: #{encoder_forward.1} parent=1 // pred_region
      _
    $region17: #{encoder_forward.1} parent=1 // pred_fallthru
      _
    // Predicated region
    $region18: #{encoder_forward.1} parent=1 // pred_check
      _
    $region19: #{encoder_forward.1} parent=1 // pred_check_branch
      %26 = sbr.rel (0) target = $region21
    $region20: #{encoder_forward.1} parent=1 // pred_region
      _
    $region21: #{encoder_forward.1} parent=1 // pred_fallthru
      _
    // Predicated region
    $region22: #{encoder_forward.1} parent=1 // pred_check
      _
    $region23: #{encoder_forward.1} parent=1 // pred_check_branch
      %28 = sbr.rel (0) target = $region25
    $region24: #{encoder_forward.1} parent=1 // pred_region
      _
    $region25: #{encoder_forward.1} parent=1 // pred_fallthru
      _
    // Predicated region
    $region26: #{encoder_forward.1} parent=1 // pred_check
      _
    $region27: #{encoder_forward.1} parent=1 // pred_check_branch
      %30 = sbr.rel (0) target = $region29
    $region28: #{encoder_forward.1} parent=1 // pred_region
      _
    $region29: #{encoder_forward.1} parent=1 // pred_fallthru
      _
    // Predicated region
    $region30: #{encoder_forward.1} parent=1 // pred_check
      _
    $region31: #{encoder_forward.1} parent=1 // pred_check_branch
      %32 = sbr.rel (0) target = $region33
    $region32: #{encoder_forward.1} parent=1 // pred_region
      _
    $region33: #{encoder_forward.1} parent=1 // pred_fallthru
      _
    // Predicated region
    $region34: #{encoder_forward.1} parent=1 // pred_check
      _
    $region35: #{encoder_forward.1} parent=1 // pred_check_branch
      %34 = sbr.rel (0) target = $region37
    $region36: #{encoder_forward.1} parent=1 // pred_region
      _
    $region37: #{encoder_forward.1} parent=1 // pred_fallthru
      _
    // Predicated region
    $region38: #{encoder_forward.1} parent=1 // pred_check
      _
    $region39: #{encoder_forward.1} parent=1 // pred_check_branch
      %36 = sbr.rel (0) target = $region41
    $region40: #{encoder_forward.1} parent=1 // pred_region
      %s38 = ssub.s32 16, 16
      %39 = vsyncadd [#allocation4], %s38
      %s41 = sshll.u32 %s9, 4
      %s42 = int_to_ptr.vmem [resolvable:$true] %s41
      %44 = dma.vmem_to_smem %s42, 16, [#allocation2], [#allocation4]
    $region41: #{encoder_forward.1} parent=1 // pred_fallthru
      _
    // Predicated region
    $region42: #{encoder_forward.1} parent=1 // pred_check
      _
    $region43: #{encoder_forward.1} parent=1 // pred_check_branch
      %46 = sbr.rel (0) target = $region45
    $region44: #{encoder_forward.1} parent=1 // pred_region
      %47 = dma.done [#allocation4], 16
    $region45: #{encoder_forward.1} parent=1 // pred_fallthru
      _
    %48 = sfence
    %v49 = vld [vmem:[%s0] sm:$0xff]
    %v50 = vld [vmem:[%s1] sm:$0xff]
    %v51 = vld [vmem:[%s1 + $0x8] sm:$0xff]
    %v52 = vld [vmem:[%s1 + $0x10] sm:$0xff]
    %v53 = vld [vmem:[%s1 + $0x18] sm:$0xff]
    %v54 = vld [vmem:[%s1 + $0x20] sm:$0xff]
    %v55 = vld [vmem:[%s1 + $0x28] sm:$0xff]
    %v56 = vld [vmem:[%s1 + $0x30] sm:$0xff]
    %v57 = vld [vmem:[%s1 + $0x38] sm:$0xff]
    %v58 = vld [vmem:[%s1 + $0x40] sm:$0xff]
    %v59 = vld [vmem:[%s1 + $0x48] sm:$0xff]
    %v60 = vld [vmem:[%s1 + $0x50] sm:$0xff]
    %v61 = vld [vmem:[%s1 + $0x58] sm:$0xff]
    %v62 = vld [vmem:[%s1 + $0x60] sm:$0xff]
    %v63 = vld [vmem:[%s1 + $0x68] sm:$0xff]
    %v64 = vld [vmem:[%s1 + $0x70] sm:$0xff]
    %v65 = vld [vmem:[%s1 + $0x78] sm:$0xff]
    %v66 = vld [vmem:[%s2] sm:$0x1]
    %v68 = vlaneseq
    %v69 = vshrl.u32 %v68, 7
    %v70 = vsub.s32 0, %v69
    %v71 = vrot.slane %v66, %v70
    %73 = vmatprep.subr.mxu0 0.0
    %74 = vmatpush1.msra.mxu0 %v65
    %75 = vmatprep.subr.mxu0 0.0
    %76 = vmatpush1.msra.mxu0 %v64
    %77 = vmatprep.subr.mxu0 0.0
    %78 = vmatpush1.msra.mxu0 %v63
    %79 = vmatprep.subr.mxu0 0.0
    %80 = vmatpush1.msra.mxu0 %v62
    %81 = vmatprep.subr.mxu0 0.0
    %82 = vmatpush1.msra.mxu0 %v61
    %83 = vmatprep.subr.mxu0 0.0
    %84 = vmatpush1.msra.mxu0 %v60
    %85 = vmatprep.subr.mxu0 0.0
    %86 = vmatpush1.msra.mxu0 %v59
    %87 = vmatprep.subr.mxu0 0.0
    %88 = vmatpush1.msra.mxu0 %v58
    %89 = vmatprep.subr.mxu0 0.0
    %90 = vmatpush1.msra.mxu0 %v57
    %91 = vmatprep.subr.mxu0 0.0
    %92 = vmatpush1.msra.mxu0 %v56
    %93 = vmatprep.subr.mxu0 0.0
    %94 = vmatpush1.msra.mxu0 %v55
    %95 = vmatprep.subr.mxu0 0.0
    %96 = vmatpush1.msra.mxu0 %v54
    %97 = vmatprep.subr.mxu0 0.0
    %98 = vmatpush1.msra.mxu0 %v53
    %99 = vmatprep.subr.mxu0 0.0
    %100 = vmatpush1.msra.mxu0 %v52
    %101 = vmatprep.subr.mxu0 0.0
    %102 = vmatpush1.msra.mxu0 %v51
    %103 = vmatprep.subr.mxu0 0.0
    %104 = vmatpush1.msra.mxu0 %v50
    %105 = vmatprep.subr.mxu0 0.0
    %106 = vmatpush2.msra.mxu0 0.0
    %107 = vmatprep.subr.mxu0 0.0
    %108 = vmatpush2.msra.mxu0 0.0
    %109 = vmatprep.subr.mxu0 0.0
    %110 = vmatpush2.msra.mxu0 0.0
    %111 = vmatprep.subr.mxu0 0.0
    %112 = vmatpush2.msra.mxu0 0.0
    %113 = vmatprep.subr.mxu0 0.0
    %114 = vmatpush2.msra.mxu0 0.0
    %115 = vmatprep.subr.mxu0 0.0
    %116 = vmatpush2.msra.mxu0 0.0
    %117 = vmatprep.subr.mxu0 0.0
    %118 = vmatpush2.msra.mxu0 0.0
    %119 = vmatprep.subr.mxu0 0.0
    %120 = vmatpush2.msra.mxu0 0.0
    %121 = vmatprep.subr.mxu0 0.0
    %122 = vmatpush2.msra.mxu0 0.0
    %123 = vmatprep.subr.mxu0 0.0
    %124 = vmatpush2.msra.mxu0 0.0
    %125 = vmatprep.subr.mxu0 0.0
    %126 = vmatpush2.msra.mxu0 0.0
    %127 = vmatprep.subr.mxu0 0.0
    %128 = vmatpush2.msra.mxu0 0.0
    %129 = vmatprep.subr.mxu0 0.0
    %130 = vmatpush2.msra.mxu0 0.0
    %131 = vmatprep.subr.mxu0 0.0
    %132 = vmatpush2.msra.mxu0 0.0
    %133 = vmatprep.subr.mxu0 0.0
    %134 = vmatpush2.msra.mxu0 0.0
    %135 = vmatprep.subr.mxu0 0.0
    %136 = vmatpush2.msra.mxu0 0.0
    %137 = vmatprep.mubr.f32.mxu0 0.0
    %138 = vmatmul.mubr.f32.gmra.mxu0 %v49
    %v139 = vpop.f32.mrf.mxu0
    %v140 = vadd.f32 %v71, %v139
    %v141 = vpop.f32.mrf.mxu0
    %142 = vdwg.mxu0
    %v143 = vld [vmem:[%s3] sm:$0x1]
    %v144 = vld [vmem:[%s4] sm:$0x1]
    %s145 = sld [smem:[#allocation2]]
    %v146 = vrot.slane %v140, 4
    %v147 = vadd.f32 %v140, %v146
    %v148 = vrot.slane %v147, 2
    %v149 = vadd.f32 %v147, %v148
    %v150 = vrot.slane %v149, 1
    %v151 = vadd.f32 %v149, %v150
    %v152 = vrcp.pop 8.0
    %v153 = vmul.f32 %v151, %v152
    %v154 = vsub.f32 %v140, %v153
    %v155 = vmul.f32 %v154, %v154
    %v156 = vrot.slane %v155, 4
    %v157 = vadd.f32 %v155, %v156
    %v158 = vrot.slane %v157, 2
    %v159 = vadd.f32 %v157, %v158
    %v160 = vrot.slane %v159, 1
    %v161 = vadd.f32 %v159, %v160
    %v162 = vmul.f32 %v161, %v152
    %v163 = vadd.f32 %v162, 1e-05
    %v164 = vrsqrt.pop %v163
    %v165 = vmul.f32 %v154, %v164
    %v167 = vlaneseq
    %v168 = vshrl.u32 %v167, 7
    %v169 = vsub.s32 0, %v168
    %v170 = vrot.slane %v143, %v169
    %v172 = vmul.f32 %v165, %v170
    %v174 = vlaneseq
    %v175 = vshrl.u32 %v174, 7
    %v176 = vsub.s32 0, %v175
    %v177 = vrot.slane %v144, %v176
    %v179 = vadd.f32 %v172, %v177
    %v180 = vmax.f32 %v179, 0.0
    %v181 = vlaneseq
    %v182 = vshrl.u32 %v181, 7
    %v183 = vlaneseq
    %v184 = vand.u32 %v183, 127
    %v185 = vmul.u32 %v182, 2654435769
    %v186 = vmul.u32 %v184, 2146121005
    %v187 = vadd.s32 %v185, %v186
    %v188 = vstv %s145
    %v189 = vadd.s32 %v187, %v188
    %v190 = vshra.s32 %v189, 16
    %v191 = vand.u32 %v190, 65535
    %v192 = vxor.u32 %v189, %v191
    %v193 = vmul.u32 %v192, 2246822507
    %v194 = vshra.s32 %v193, 13
    %v195 = vand.u32 %v194, 524287
    %v196 = vxor.u32 %v193, %v195
    %v197 = vmul.u32 %v196, 3266489909
    %v198 = vshra.s32 %v197, 16
    %v199 = vand.u32 %v198, 65535
    %v200 = vxor.u32 %v197, %v199
    %vm201 = vcmp.ge.s32.totalorder %v200, 3006477107
    %v202 = vmul.f32 %v180, 1.25
    %v203 = vsel %vm201, %v202, 0.0
    %v204 = vld [vmem:[%s5] sm:$0xff]
    %v205 = vld [vmem:[%s5 + $0x8] sm:$0xff]
    %v206 = vld [vmem:[%s5 + $0x10] sm:$0xff]
    %v207 = vld [vmem:[%s5 + $0x18] sm:$0xff]
    %v208 = vld [vmem:[%s5 + $0x20] sm:$0xff]
    %v209 = vld [vmem:[%s5 + $0x28] sm:$0xff]
    %v210 = vld [vmem:[%s5 + $0x30] sm:$0xff]
    %v211 = vld [vmem:[%s5 + $0x38] sm:$0xff]
    %v212 = vld [vmem:[%s5 + $0x40] sm:$0xff]
    %v213 = vld [vmem:[%s5 + $0x48] sm:$0xff]
    %v214 = vld [vmem:[%s5 + $0x50] sm:$0xff]
    %v215 = vld [vmem:[%s5 + $0x58] sm:$0xff]
    %v216 = vld [vmem:[%s5 + $0x60] sm:$0xff]
    %v217 = vld [vmem:[%s5 + $0x68] sm:$0xff]
    %v218 = vld [vmem:[%s5 + $0x70] sm:$0xff]
    %v219 = vld [vmem:[%s5 + $0x78] sm:$0xff]
    %v220 = vld [vmem:[%s6] sm:$0x1]
    %v222 = vlaneseq
    %v223 = vshrl.u32 %v222, 7
    %v224 = vsub.s32 0, %v223
    %v225 = vrot.slane %v220, %v224
    %227 = vmatprep.subr.mxu0 0.0
    %228 = vmatpush1.msra.mxu0 %v219
    %229 = vmatprep.subr.mxu0 0.0
    %230 = vmatpush1.msra.mxu0 %v218
    %231 = vmatprep.subr.mxu0 0.0
    %232 = vmatpush1.msra.mxu0 %v217
    %233 = vmatprep.subr.mxu0 0.0
    %234 = vmatpush1.msra.mxu0 %v216
    %235 = vmatprep.subr.mxu0 0.0
    %236 = vmatpush1.msra.mxu0 %v215
    %237 = vmatprep.subr.mxu0 0.0
    %238 = vmatpush1.msra.mxu0 %v214
    %239 = vmatprep.subr.mxu0 0.0
    %240 = vmatpush1.msra.mxu0 %v213
    %241 = vmatprep.subr.mxu0 0.0
    %242 = vmatpush1.msra.mxu0 %v212
    %243 = vmatprep.subr.mxu0 0.0
    %244 = vmatpush1.msra.mxu0 %v211
    %245 = vmatprep.subr.mxu0 0.0
    %246 = vmatpush1.msra.mxu0 %v210
    %247 = vmatprep.subr.mxu0 0.0
    %248 = vmatpush1.msra.mxu0 %v209
    %249 = vmatprep.subr.mxu0 0.0
    %250 = vmatpush1.msra.mxu0 %v208
    %251 = vmatprep.subr.mxu0 0.0
    %252 = vmatpush1.msra.mxu0 %v207
    %253 = vmatprep.subr.mxu0 0.0
    %254 = vmatpush1.msra.mxu0 %v206
    %255 = vmatprep.subr.mxu0 0.0
    %256 = vmatpush1.msra.mxu0 %v205
    %257 = vmatprep.subr.mxu0 0.0
    %258 = vmatpush1.msra.mxu0 %v204
    %259 = vmatprep.subr.mxu0 0.0
    %260 = vmatpush2.msra.mxu0 0.0
    %261 = vmatprep.subr.mxu0 0.0
    %262 = vmatpush2.msra.mxu0 0.0
    %263 = vmatprep.subr.mxu0 0.0
    %264 = vmatpush2.msra.mxu0 0.0
    %265 = vmatprep.subr.mxu0 0.0
    %266 = vmatpush2.msra.mxu0 0.0
    %267 = vmatprep.subr.mxu0 0.0
    %268 = vmatpush2.msra.mxu0 0.0
    %269 = vmatprep.subr.mxu0 0.0
    %270 = vmatpush2.msra.mxu0 0.0
    %271 = vmatprep.subr.mxu0 0.0
    %272 = vmatpush2.msra.mxu0 0.0
    %273 = vmatprep.subr.mxu0 0.0
    %274 = vmatpush2.msra.mxu0 0.0
    %275 = vmatprep.subr.mxu0 0.0
    %276 = vmatpush2.msra.mxu0 0.0
    %277 = vmatprep.subr.mxu0 0.0
    %278 = vmatpush2.msra.mxu0 0.0
    %279 = vmatprep.subr.mxu0 0.0
    %280 = vmatpush2.msra.mxu0 0.0
    %281 = vmatprep.subr.mxu0 0.0
    %282 = vmatpush2.msra.mxu0 0.0
    %283 = vmatprep.subr.mxu0 0.0
    %284 = vmatpush2.msra.mxu0 0.0
    %285 = vmatprep.subr.mxu0 0.0
    %286 = vmatpush2.msra.mxu0 0.0
    %287 = vmatprep.subr.mxu0 0.0
    %288 = vmatpush2.msra.mxu0 0.0
    %289 = vmatprep.subr.mxu0 0.0
    %290 = vmatpush2.msra.mxu0 0.0
    %291 = vmatprep.mubr.f32.mxu0 0.0
    %292 = vmatmul.mubr.f32.gmra.mxu0 %v203
    %v293 = vpop.f32.mrf.mxu0
    %v294 = vadd.f32 %v225, %v293
    %v295 = vpop.f32.mrf.mxu0
    %296 = vdwg.mxu0
    %v297 = vld [vmem:[%s7] sm:$0x1]
    %v298 = vld [vmem:[%s8] sm:$0x1]
    %s299 = sld [smem:[#allocation2 + $0x1]]
    %v300 = vrot.slane %v294, 4
    %v301 = vadd.f32 %v294, %v300
    %v302 = vrot.slane %v301, 2
    %v303 = vadd.f32 %v301, %v302
    %v304 = vrot.slane %v303, 1
    %v305 = vadd.f32 %v303, %v304
    %v306 = vmul.f32 %v305, %v152
    %v307 = vsub.f32 %v294, %v306
    %v308 = vmul.f32 %v307, %v307
    %v309 = vrot.slane %v308, 4
    %v310 = vadd.f32 %v308, %v309
    %v311 = vrot.slane %v310, 2
    %v312 = vadd.f32 %v310, %v311
    %v313 = vrot.slane %v312, 1
    %v314 = vadd.f32 %v312, %v313
    %v315 = vmul.f32 %v314, %v152
    %v316 = vadd.f32 %v315, 1e-05
    %v317 = vrsqrt.pop %v316
    %v318 = vmul.f32 %v307, %v317
    %v320 = vlaneseq
    %v321 = vshrl.u32 %v320, 7
    %v322 = vsub.s32 0, %v321
    %v323 = vrot.slane %v297, %v322
    %v325 = vmul.f32 %v318, %v323
    %v327 = vlaneseq
    %v328 = vshrl.u32 %v327, 7
    %v329 = vsub.s32 0, %v328
    %v330 = vrot.slane %v298, %v329
    %v332 = vadd.f32 %v325, %v330
    %v333 = vmax.f32 %v332, 0.0
    %v334 = vstv %s299
    %v335 = vadd.s32 %v187, %v334
    %v336 = vshra.s32 %v335, 16
    %v337 = vand.u32 %v336, 65535
    %v338 = vxor.u32 %v335, %v337
    %v339 = vmul.u32 %v338, 2246822507
    %v340 = vshra.s32 %v339, 13
    %v341 = vand.u32 %v340, 524287
    %v342 = vxor.u32 %v339, %v341
    %v343 = vmul.u32 %v342, 3266489909
    %v344 = vshra.s32 %v343, 16
    %v345 = vand.u32 %v344, 65535
    %v346 = vxor.u32 %v343, %v345
    %vm347 = vcmp.ge.s32.totalorder %v346, 3006477107
    %v348 = vmul.f32 %v333, 1.25
    %v349 = vsel %vm347, %v348, 0.0
    %350 = vst [vmem:[#allocation5] sm:$0xff] %v349
    // Predicated region
    $region46: #{encoder_forward.1} parent=1 // pred_check
      _
    $region47: #{encoder_forward.1} parent=1 // pred_check_branch
      %352 = sbr.rel (0) target = $region49
    $region48: #{encoder_forward.1} parent=1 // pred_region
      %s354 = ssub.s32 128, 128
      %355 = vsyncadd [#allocation3], %s354
      %s357 = sshll.u32 [#allocation5], 4
      %s358 = int_to_ptr.vmem [resolvable:$true] %s357
      %360 = dma.vmem_to_hbm [thread:$0]  %s358, 128, %s10, [#allocation3]
    $region49: #{encoder_forward.1} parent=1 // pred_fallthru
      _
    // Predicated region
    $region50: #{encoder_forward.1} parent=1 // pred_check
      _
    $region51: #{encoder_forward.1} parent=1 // pred_check_branch
      %362 = sbr.rel (0) target = $region53
    $region52: #{encoder_forward.1} parent=1 // pred_region
      %363 = dma.done [#allocation3], 128
    $region53: #{encoder_forward.1} parent=1 // pred_fallthru
      _
    %364 = vsyncpa [#allocation3], 1
    %365 = vsyncpa [#allocation4], 1

</llo_original>
